<compile_context>
chip_gen: v5e
topology: v5e:2x2
jax: 0.10.0
libtpu: 0.0.40
codegen_flags: <defaults>
</compile_context>

<pallas_src>
import jax
import jax.numpy as jnp
from jax import lax
from jax.experimental import pallas as pl
from jax.experimental.pallas import tpu as pltpu

ALPHA = 0.1
NUM_SPLITS = 2     # unconditional 2-way row split (v7x megacore; harmless elsewhere)
TR_MAX = 512       # row-tile bound; multiple of 32 -> sublane-aligned for f32/bf16/int8
LANE_MAX = 2048    # lane-width bound (multiple of 128)


def _cdiv(a, b):
    return -(-a // b)


def _pick_lane_width(total):
    """Largest multiple of 128 in [128, LANE_MAX] dividing `total` (copy-free
    reshape); otherwise a bounded width with a small jnp tail for the rest."""
    for lanes in range(LANE_MAX, 127, -128):
        if total >= lanes and total % lanes == 0:
            return lanes
    return max(128, min(1024, (total // 128) * 128))


def kd_feature_loss_two(map_teacher1, map_student1, pred_noise, pred_clean,
                        label, alpha=ALPHA):
    n, n_cls = pred_noise.shape
    inv_n = 1.0 / float(n)
    labels = label.astype(jnp.int32).reshape(n, 1)

    # ---- lane-dense (M, L) view of the flattened feature maps -------------
    flat_t = map_teacher1.reshape(-1)
    flat_s = map_student1.reshape(-1)
    total = flat_t.shape[0]
    inv_total = 1.0 / float(total)

    L = _pick_lane_width(total)
    M = total // L
    rem = total - M * L

    if M == 0:
        # Degenerate tiny map: the whole MSE goes through the jnp tail below;
        # feed the kernel a zero dummy so its structure stays unchanged.
        t2d = jnp.zeros((8, 128), jnp.float32)
        s2d = t2d
        M, L, rem = 8, 128, total
    elif rem:
        # Ragged remainder (< L elements): slice the main part (small copy)
        # + tiny jnp tail; avoids materializing a zero-padded full copy.
        t2d = flat_t[:M * L].reshape(M, L)
        s2d = flat_s[:M * L].reshape(M, L)
    else:
        t2d = flat_t.reshape(M, L)        # copy-free reshape
        s2d = flat_s.reshape(M, L)

    # ---- bounded, dtype-aware row tiling -----------------------------------
    sub_align = {4: 8, 2: 16, 1: 32}.get(jnp.dtype(t2d.dtype).itemsize, 8)
    if M >= TR_MAX:
        TR = TR_MAX                        # <= 4 MiB f32 tile at L = 2048
    elif M >= sub_align:
        TR = (M // sub_align) * sub_align  # aligned; ragged last tile is masked
    else:
        TR = M                             # block == full dim (always legal)

    tiles_total = _cdiv(M, TR)             # row tiles covering the array
    nt = _cdiv(tiles_total, NUM_SPLITS)    # row tiles per split (grid axis 1)

    if TR % 8 == 0:
        SUB, G = 8, TR // 8                # (8, L) accumulator strip
    else:
        SUB, G = TR, 1                     # tiny tile: accumulate as-is

    def kernel(pn_ref, pc_ref, lab_ref, t_ref, s_ref, out_ref, acc_ref):
        h = pl.program_id(0)               # split (parallel across v7x cores)
        i = pl.program_id(1)               # row tile within the split

        @pl.when(i == 0)
        def _init():
            acc_ref[...] = jnp.zeros_like(acc_ref)

        # ---- per-step: pure VPU cast/sub/mul/add chain ---------------------
        d = t_ref[...].astype(jnp.float32) - s_ref[...].astype(jnp.float32)
        dd = d * d

        def fold(x):                       # (TR, L) -> (SUB, L): plain VPU adds
            if G > 1:
                return jnp.sum(x.reshape(G, SUB, L), axis=0)
            return x

        tile_idx = h * nt + i              # unclamped logical tile index
        row_base = tile_idx * TR
        is_full = row_base + TR <= M       # fully-valid (common) tile?

        @pl.when(is_full)
        def _acc_full():
            acc_ref[...] += fold(dd)

        @pl.when(jnp.logical_not(is_full))
        def _acc_ragged():                 # ragged last tile or clamped duplicate
            rows = lax.broadcasted_iota(jnp.int32, (TR, 1), 0) + row_base
            acc_ref[...] += fold(jnp.where(rows < M, dd, 0.0))

        # ---- finalize: one XLU reduce + (split 0 only) the CE epilogue -----
        @pl.when(i == nt - 1)
        def _finalize():
            part = (alpha * inv_total) * jnp.sum(acc_ref[...])
            out_ref[...] = jnp.full(out_ref.shape, part, jnp.float32)

            @pl.when(h == 0)
            def _ce():
                def ce_sum(lg):
                    lg = lg.astype(jnp.float32)
                    m = jnp.max(lg, axis=-1, keepdims=True)
                    lse = jnp.log(jnp.sum(jnp.exp(lg - m), axis=-1,
                                          keepdims=True)) + m
                    cls = lax.broadcasted_iota(jnp.int32, lg.shape, 1)
                    picked = jnp.sum(
                        jnp.where(cls == lab_ref[...], lg, 0.0),
                        axis=-1, keepdims=True)
                    return jnp.sum(lse - picked)

                ce = (ce_sum(pn_ref[...]) + ce_sum(pc_ref[...])) * inv_n
                out_ref[...] = out_ref[...] + ce

    def row_map(hh, ii):
        # Clamp so a duplicate tile (odd tile count split over 2 cores) re-reads
        # the last real tile instead of an out-of-range block; it is fully
        # masked out in-kernel.
        return (jnp.minimum(hh * nt + ii, tiles_total - 1), 0)

    out = pl.pallas_call(
        kernel,
        out_shape=jax.ShapeDtypeStruct((NUM_SPLITS, 8, 128), jnp.float32),
        grid_spec=pltpu.PrefetchScalarGridSpec(
            num_scalar_prefetch=0,
            grid=(NUM_SPLITS, nt),
            in_specs=[
                pl.BlockSpec((n, n_cls), lambda hh, ii: (0, 0)),   # pred_noise
                pl.BlockSpec((n, n_cls), lambda hh, ii: (0, 0)),   # pred_clean
                pl.BlockSpec((n, 1), lambda hh, ii: (0, 0)),       # labels
                pl.BlockSpec((TR, L), row_map),                    # teacher map
                pl.BlockSpec((TR, L), row_map),                    # student map
            ],
            out_specs=pl.BlockSpec((1, 8, 128), lambda hh, ii: (hh, 0, 0)),
            scratch_shapes=[pltpu.VMEM((SUB, L), jnp.float32)],
        ),
        compiler_params=pltpu.CompilerParams(
            # TODO(synk): switch axis 0 to pltpu.CORE_PARALLEL if a given Mosaic
            # build does not shard a plain "parallel" axis across v7x cores.
            dimension_semantics=("parallel", "arbitrary"),
            vmem_limit_bytes=32 * 1024 * 1024),
    )(pred_noise, pred_clean, labels, t2d, s2d)

    loss = jnp.sum(out[:, 0, 0])           # (ce + mse_part0) + mse_part1

    if rem:
        # Tiny ragged tail (< L elements, or the whole map when M was 0).
        tt = flat_t[total - rem:].astype(jnp.float32)
        ts = flat_s[total - rem:].astype(jnp.float32)
        loss = loss + (alpha * inv_total) * jnp.sum((tt - ts) * (tt - ts))
    return loss


def reference_loss(map_teacher1, map_student1, pred_noise, pred_clean, label,
                   alpha=ALPHA):
    def ce(lg, lab):
        logp = jax.nn.log_softmax(lg.astype(jnp.float32), axis=-1)
        return -jnp.mean(jnp.take_along_axis(logp, lab[:, None], axis=-1))

    loss_ce = ce(pred_noise, label) + ce(pred_clean, label)
    diff = map_teacher1.astype(jnp.float32) - map_student1.astype(jnp.float32)
    return loss_ce + alpha * jnp.mean(diff * diff)


if __name__ == "__main__":
    key = jax.random.PRNGKey(0)
    k1, k2, k3, k4, k5 = jax.random.split(key, 5)

    N, C_CLS = 8, 32          # logits: (batch, num_classes)
    FC, H, W = 4, 16, 16      # feature maps: NCHW

    map_teacher1 = jax.random.normal(k1, (N, FC, H, W), dtype=jnp.float32)
    map_student1 = jax.random.normal(k2, (N, FC, H, W), dtype=jnp.float32)
    pred_noise = jax.random.normal(k3, (N, C_CLS), dtype=jnp.float32)
    pred_clean = jax.random.normal(k4, (N, C_CLS), dtype=jnp.float32)
    label = jax.random.randint(k5, (N,), 0, C_CLS, dtype=jnp.int32)

    loss = kd_feature_loss_two(map_teacher1, map_student1,
                               pred_noise, pred_clean, label)
    loss = jax.block_until_ready(loss)

    ref = reference_loss(map_teacher1, map_student1,
                         pred_noise, pred_clean, label)
    assert jnp.allclose(loss, ref, rtol=1e-5, atol=1e-5), (loss, ref)

    print("KERNEL_OK")
</pallas_src>

<mosaic_0001>
module attributes {stable_mosaic.version = 11 : i64} {
  func.func @kernel(%arg0: i32, %arg1: i32, %arg2: memref<8x32xf32, #tpu.memory_space<vmem>>, %arg3: memref<8x32xf32, #tpu.memory_space<vmem>>, %arg4: memref<8x1xi32, #tpu.memory_space<vmem>>, %arg5: memref<4x2048xf32, #tpu.memory_space<vmem>>, %arg6: memref<4x2048xf32, #tpu.memory_space<vmem>>, %arg7: memref<1x8x128xf32, #tpu.memory_space<vmem>>, %arg8: memref<4x2048xf32, #tpu.memory_space<vmem>>) attributes {dimension_semantics = [#tpu.dimension_semantics<parallel>, #tpu.dimension_semantics<arbitrary>], iteration_bounds = array<i64: 2, 1>, scalar_prefetch = 0 : i64, scratch_operands = 1 : i64, tpu.core_type = #tpu.core_type<tc>, window_params = [{pipeline_mode = #tpu.pipeline_mode<synchronous>, transform_indices = @transform_0, window_bounds = array<i64: 8, 32>}, {pipeline_mode = #tpu.pipeline_mode<synchronous>, transform_indices = @transform_1, window_bounds = array<i64: 8, 32>}, {pipeline_mode = #tpu.pipeline_mode<synchronous>, transform_indices = @transform_2, window_bounds = array<i64: 8, 1>}, {transform_indices = @transform_3, window_bounds = array<i64: 4, 2048>}, {transform_indices = @transform_4, window_bounds = array<i64: 4, 2048>}, {transform_indices = @transform_5, window_bounds = array<i64: 1, 8, 128>}]} {
    %c0_i32 = arith.constant 0 : i32
    %0 = arith.cmpi eq, %arg1, %c0_i32 : i32
    %1 = arith.extui %0 : i1 to i32
    %c0_i32_0 = arith.constant 0 : i32
    %2 = arith.cmpi ne, %1, %c0_i32_0 : i32
    scf.if %2 {
      %cst = arith.constant 0.000000e+00 : f32
      %20 = vector.broadcast %cst : f32 to vector<4x2048xf32>
      %c0_10 = arith.constant 0 : index
      %c0_11 = arith.constant 0 : index
      %21 = vector.load %arg8[%c0_10, %c0_11] : memref<4x2048xf32, #tpu.memory_space<vmem>>, vector<4x2048xf32>
      tpu.vector_store %arg8[%c0_10, %c0_11], %20 {strides = array<i32>} : memref<4x2048xf32, #tpu.memory_space<vmem>>, vector<4x2048xf32>,
    } else {
    }
    %c0 = arith.constant 0 : index
    %c0_1 = arith.constant 0 : index
    %3 = vector.load %arg5[%c0, %c0_1] : memref<4x2048xf32, #tpu.memory_space<vmem>>, vector<4x2048xf32>
    %c0_2 = arith.constant 0 : index
    %c0_3 = arith.constant 0 : index
    %4 = vector.load %arg6[%c0_2, %c0_3] : memref<4x2048xf32, #tpu.memory_space<vmem>>, vector<4x2048xf32>
    %5 = arith.subf %3, %4 : vector<4x2048xf32>
    %6 = arith.mulf %5, %5 : vector<4x2048xf32>
    %c1_i32 = arith.constant 1 : i32
    %7 = arith.muli %arg0, %c1_i32 : i32
    %8 = arith.addi %7, %arg1 : i32
    %c4_i32 = arith.constant 4 : i32
    %9 = arith.muli %8, %c4_i32 : i32
    %c4_i32_4 = arith.constant 4 : i32
    %10 = arith.addi %9, %c4_i32_4 : i32
    %c4_i32_5 = arith.constant 4 : i32
    %11 = arith.cmpi sle, %10, %c4_i32_5 : i32
    %12 = arith.extui %11 : i1 to i32
    %c0_i32_6 = arith.constant 0 : i32
    %13 = arith.cmpi ne, %12, %c0_i32_6 : i32
    scf.if %13 {
      %c0_10 = arith.constant 0 : index
      %c0_11 = arith.constant 0 : index
      %20 = vector.load %arg8[%c0_10, %c0_11] : memref<4x2048xf32, #tpu.memory_space<vmem>>, vector<4x2048xf32>
      %21 = arith.addf %20, %6 : vector<4x2048xf32>
      %c0_12 = arith.constant 0 : index
      %c0_13 = arith.constant 0 : index
      %22 = vector.load %arg8[%c0_12, %c0_13] : memref<4x2048xf32, #tpu.memory_space<vmem>>, vector<4x2048xf32>
      tpu.vector_store %arg8[%c0_12, %c0_13], %21 {strides = array<i32>} : memref<4x2048xf32, #tpu.memory_space<vmem>>, vector<4x2048xf32>,
    } else {
    }
    %true = arith.constant true
    %14 = arith.xori %11, %true : i1
    %15 = arith.extui %14 : i1 to i32
    %c0_i32_7 = arith.constant 0 : i32
    %16 = arith.cmpi ne, %15, %c0_i32_7 : i32
    scf.if %16 {
      %20 = tpu.iota {dimensions = array<i32: 0>} : vector<4x1xi32>
      %21 = vector.broadcast %9 : i32 to vector<4x1xi32>
      %22 = arith.addi %20, %21 : vector<4x1xi32>
      %c0_10 = arith.constant 0 : index
      %c0_11 = arith.constant 0 : index
      %23 = vector.load %arg8[%c0_10, %c0_11] : memref<4x2048xf32, #tpu.memory_space<vmem>>, vector<4x2048xf32>
      %c4_i32_12 = arith.constant 4 : i32
      %24 = vector.broadcast %c4_i32_12 : i32 to vector<4x1xi32>
      %25 = arith.cmpi slt, %22, %24 : vector<4x1xi32>
      %cst = arith.constant 0.000000e+00 : f32
      %26 = vector.shape_cast %25 : vector<4x1xi1> to vector<4x1xi1>
      %27 = vector.broadcast %26 : vector<4x1xi1> to vector<4x2048xi1>
      %28 = vector.broadcast %cst : f32 to vector<4x2048xf32>
      %29 = arith.select %27, %6, %28 : vector<4x2048xi1>, vector<4x2048xf32>
      %30 = arith.addf %23, %29 : vector<4x2048xf32>
      %c0_13 = arith.constant 0 : index
      %c0_14 = arith.constant 0 : index
      %31 = vector.load %arg8[%c0_13, %c0_14] : memref<4x2048xf32, #tpu.memory_space<vmem>>, vector<4x2048xf32>
      tpu.vector_store %arg8[%c0_13, %c0_14], %30 {strides = array<i32>} : memref<4x2048xf32, #tpu.memory_space<vmem>>, vector<4x2048xf32>,
    } else {
    }
    %c0_i32_8 = arith.constant 0 : i32
    %17 = arith.cmpi eq, %arg1, %c0_i32_8 : i32
    %18 = arith.extui %17 : i1 to i32
    %c0_i32_9 = arith.constant 0 : i32
    %19 = arith.cmpi ne, %18, %c0_i32_9 : i32
    scf.if %19 {
      %c0_10 = arith.constant 0 : index
      %c0_11 = arith.constant 0 : index
      %20 = vector.load %arg8[%c0_10, %c0_11] : memref<4x2048xf32, #tpu.memory_space<vmem>>, vector<4x2048xf32>
      %21 = vector.shape_cast %20 : vector<4x2048xf32> to vector<1x4x2048xf32>
      %cst = arith.constant dense<0.000000e+00> : vector<1xf32>
      %22 = vector.multi_reduction <add>, %21, %cst [1, 2] : vector<1x4x2048xf32> to vector<1xf32>
      %23 = vector.shape_cast %22 : vector<1xf32> to vector<1x1x1xf32>
      %24 = vector.extract %23[0, 0, 0] : f32 from vector<1x1x1xf32>
      %cst_12 = arith.constant 1.22070314E-5 : f32
      %25 = arith.mulf %cst_12, %24 : f32
      %26 = vector.broadcast %25 : f32 to vector<1x8x128xf32>
      %c0_13 = arith.constant 0 : index
      %c0_14 = arith.constant 0 : index
      %c0_15 = arith.constant 0 : index
      %27 = vector.load %arg7[%c0_13, %c0_14, %c0_15] : memref<1x8x128xf32, #tpu.memory_space<vmem>>, vector<1x8x128xf32>
      tpu.vector_store %arg7[%c0_13, %c0_14, %c0_15], %26 {strides = array<i32>} : memref<1x8x128xf32, #tpu.memory_space<vmem>>, vector<1x8x128xf32>,
      %c0_i32_16 = arith.constant 0 : i32
      %28 = arith.cmpi eq, %arg0, %c0_i32_16 : i32
      %29 = arith.extui %28 : i1 to i32
      %c0_i32_17 = arith.constant 0 : i32
      %30 = arith.cmpi ne, %29, %c0_i32_17 : i32
      scf.if %30 {
        %c0_18 = arith.constant 0 : index
        %c0_19 = arith.constant 0 : index
        %31 = vector.load %arg2[%c0_18, %c0_19] : memref<8x32xf32, #tpu.memory_space<vmem>>, vector<8x32xf32>
        %cst_20 = arith.constant dense<0xFF800000> : vector<8xf32>
        %32 = vector.multi_reduction <maximumf>, %31, %cst_20 [1] : vector<8x32xf32> to vector<8xf32>
        %33 = vector.shape_cast %32 : vector<8xf32> to vector<8x1xf32>
        %34 = vector.broadcast %33 : vector<8x1xf32> to vector<8x32xf32>
        %35 = arith.subf %31, %34 : vector<8x32xf32>
        %36 = math.exp %35 : vector<8x32xf32>
        %cst_21 = arith.constant dense<0.000000e+00> : vector<8xf32>
        %37 = vector.multi_reduction <add>, %36, %cst_21 [1] : vector<8x32xf32> to vector<8xf32>
        %38 = vector.shape_cast %37 : vector<8xf32> to vector<8x1xf32>
        %39 = math.log %38 : vector<8x1xf32>
        %40 = arith.addf %39, %33 : vector<8x1xf32>
        %41 = tpu.iota {dimensions = array<i32: 1>} : vector<8x32xi32>
        %c0_22 = arith.constant 0 : index
        %c0_23 = arith.constant 0 : index
        %42 = vector.load %arg4[%c0_22, %c0_23] : memref<8x1xi32, #tpu.memory_space<vmem>>, vector<8x1xi32>
        %43 = vector.broadcast %42 : vector<8x1xi32> to vector<8x32xi32>
        %44 = arith.cmpi eq, %41, %43 : vector<8x32xi32>
        %cst_24 = arith.constant 0.000000e+00 : f32
        %45 = vector.broadcast %cst_24 : f32 to vector<8x32xf32>
        %46 = arith.select %44, %31, %45 : vector<8x32xi1>, vector<8x32xf32>
        %cst_25 = arith.constant dense<0.000000e+00> : vector<8xf32>
        %47 = vector.multi_reduction <add>, %46, %cst_25 [1] : vector<8x32xf32> to vector<8xf32>
        %48 = vector.shape_cast %47 : vector<8xf32> to vector<8x1xf32>
        %49 = arith.subf %40, %48 : vector<8x1xf32>
        %50 = vector.shape_cast %49 : vector<8x1xf32> to vector<1x8x1xf32>
        %cst_26 = arith.constant dense<0.000000e+00> : vector<1xf32>
        %51 = vector.multi_reduction <add>, %50, %cst_26 [1, 2] : vector<1x8x1xf32> to vector<1xf32>
        %52 = vector.shape_cast %51 : vector<1xf32> to vector<1x1x1xf32>
        %53 = vector.extract %52[0, 0, 0] : f32 from vector<1x1x1xf32>
        %c0_27 = arith.constant 0 : index
        %c0_28 = arith.constant 0 : index
        %54 = vector.load %arg3[%c0_27, %c0_28] : memref<8x32xf32, #tpu.memory_space<vmem>>, vector<8x32xf32>
        %cst_29 = arith.constant dense<0xFF800000> : vector<8xf32>
        %55 = vector.multi_reduction <maximumf>, %54, %cst_29 [1] : vector<8x32xf32> to vector<8xf32>
        %56 = vector.shape_cast %55 : vector<8xf32> to vector<8x1xf32>
        %57 = vector.broadcast %56 : vector<8x1xf32> to vector<8x32xf32>
        %58 = arith.subf %54, %57 : vector<8x32xf32>
        %59 = math.exp %58 : vector<8x32xf32>
        %cst_30 = arith.constant dense<0.000000e+00> : vector<8xf32>
        %60 = vector.multi_reduction <add>, %59, %cst_30 [1] : vector<8x32xf32> to vector<8xf32>
        %61 = vector.shape_cast %60 : vector<8xf32> to vector<8x1xf32>
        %62 = math.log %61 : vector<8x1xf32>
        %63 = arith.addf %62, %56 : vector<8x1xf32>
        %64 = tpu.iota {dimensions = array<i32: 1>} : vector<8x32xi32>
        %c0_31 = arith.constant 0 : index
        %c0_32 = arith.constant 0 : index
        %65 = vector.load %arg4[%c0_31, %c0_32] : memref<8x1xi32, #tpu.memory_space<vmem>>, vector<8x1xi32>
        %66 = vector.broadcast %65 : vector<8x1xi32> to vector<8x32xi32>
        %67 = arith.cmpi eq, %64, %66 : vector<8x32xi32>
        %cst_33 = arith.constant 0.000000e+00 : f32
        %68 = vector.broadcast %cst_33 : f32 to vector<8x32xf32>
        %69 = arith.select %67, %54, %68 : vector<8x32xi1>, vector<8x32xf32>
        %cst_34 = arith.constant dense<0.000000e+00> : vector<8xf32>
        %70 = vector.multi_reduction <add>, %69, %cst_34 [1] : vector<8x32xf32> to vector<8xf32>
        %71 = vector.shape_cast %70 : vector<8xf32> to vector<8x1xf32>
        %72 = arith.subf %63, %71 : vector<8x1xf32>
        %73 = vector.shape_cast %72 : vector<8x1xf32> to vector<1x8x1xf32>
        %cst_35 = arith.constant dense<0.000000e+00> : vector<1xf32>
        %74 = vector.multi_reduction <add>, %73, %cst_35 [1, 2] : vector<1x8x1xf32> to vector<1xf32>
        %75 = vector.shape_cast %74 : vector<1xf32> to vector<1x1x1xf32>
        %76 = vector.extract %75[0, 0, 0] : f32 from vector<1x1x1xf32>
        %77 = arith.addf %53, %76 : f32
        %cst_36 = arith.constant 1.250000e-01 : f32
        %78 = arith.mulf %77, %cst_36 : f32
        %c0_37 = arith.constant 0 : index
        %c0_38 = arith.constant 0 : index
        %c0_39 = arith.constant 0 : index
        %79 = vector.load %arg7[%c0_37, %c0_38, %c0_39] : memref<1x8x128xf32, #tpu.memory_space<vmem>>, vector<1x8x128xf32>
        %80 = vector.broadcast %78 : f32 to vector<1x8x128xf32>
        %81 = arith.addf %79, %80 : vector<1x8x128xf32>
        %c0_40 = arith.constant 0 : index
        %c0_41 = arith.constant 0 : index
        %c0_42 = arith.constant 0 : index
        %82 = vector.load %arg7[%c0_40, %c0_41, %c0_42] : memref<1x8x128xf32, #tpu.memory_space<vmem>>, vector<1x8x128xf32>
        tpu.vector_store %arg7[%c0_40, %c0_41, %c0_42], %81 {strides = array<i32>} : memref<1x8x128xf32, #tpu.memory_space<vmem>>, vector<1x8x128xf32>,
      } else {
      }
    } else {
    }
    return
  }
  func.func @transform_0(%arg0: i32, %arg1: i32) -> (i32, i32) {
    %c0_i32 = arith.constant 0 : i32
    %c0_i32_0 = arith.constant 0 : i32
    %c0_i32_1 = arith.constant 0 : i32
    return %c0_i32, %c0_i32_0 : i32, i32
  }
  func.func @transform_1(%arg0: i32, %arg1: i32) -> (i32, i32) {
    %c0_i32 = arith.constant 0 : i32
    %c0_i32_0 = arith.constant 0 : i32
    %c0_i32_1 = arith.constant 0 : i32
    return %c0_i32, %c0_i32_0 : i32, i32
  }
  func.func @transform_2(%arg0: i32, %arg1: i32) -> (i32, i32) {
    %c0_i32 = arith.constant 0 : i32
    %c0_i32_0 = arith.constant 0 : i32
    %c0_i32_1 = arith.constant 0 : i32
    return %c0_i32, %c0_i32_0 : i32, i32
  }
  func.func @transform_3(%arg0: i32, %arg1: i32) -> (i32, i32) {
    %c1_i32 = arith.constant 1 : i32
    %0 = arith.muli %arg0, %c1_i32 : i32
    %1 = arith.addi %0, %arg1 : i32
    %c0_i32 = arith.constant 0 : i32
    %2 = arith.minsi %1, %c0_i32 : i32
    %c0_i32_0 = arith.constant 0 : i32
    %c0_i32_1 = arith.constant 0 : i32
    return %2, %c0_i32_0 : i32, i32
  }
  func.func @transform_4(%arg0: i32, %arg1: i32) -> (i32, i32) {
    %c1_i32 = arith.constant 1 : i32
    %0 = arith.muli %arg0, %c1_i32 : i32
    %1 = arith.addi %0, %arg1 : i32
    %c0_i32 = arith.constant 0 : i32
    %2 = arith.minsi %1, %c0_i32 : i32
    %c0_i32_0 = arith.constant 0 : i32
    %c0_i32_1 = arith.constant 0 : i32
    return %2, %c0_i32_0 : i32, i32
  }
  func.func @transform_5(%arg0: i32, %arg1: i32) -> (i32, i32, i32) {
    %c0_i32 = arith.constant 0 : i32
    %c0_i32_0 = arith.constant 0 : i32
    %c0_i32_1 = arith.constant 0 : i32
    return %arg0, %c0_i32, %c0_i32_0 : i32, i32, i32
  }
}

</mosaic_0001>

<llo_original>
// kernel: tpu_custom_call.1
$region0: #{tpu_custom_call.1}
  #allocation0 [shape = 'u32[]', space=smem, size = 0x4, offset = 0x4, fixed_abs, tag = 'smem constant byte address 0x4 - core index']
  #allocation1 [shape = 'u32[72,128]{1,0:T(1,128)}', space=vmem, size = 0x9000, scoped, tag = 'internal scratch']
  #allocation2 [shape = 'f32[4,2048]{1,0:T(4,128)}', space=vmem, size = 0x8000, scoped, tag = 'scratch operand']
  %s0 = inlined_call_operand.vmem [shape: f32[8,32], index: 0, kind: input, shape index: {}]
  %s1 = inlined_call_operand.hbm [shape: f32[8,32], index: 1, kind: input, shape index: {}]
  %s2 = inlined_call_operand.vmem [shape: s32[8,1], index: 2, kind: input, shape index: {}]
  %s3 = inlined_call_operand.hbm [shape: f32[4,2048], index: 3, kind: input, shape index: {}]
  %s4 = inlined_call_operand.hbm [shape: f32[4,2048], index: 4, kind: input, shape index: {}]
  %s5 = inlined_call_operand.hbm [shape: f32[2,8,128], index: 5, kind: output, shape index: {}]
  %s6 = sld [smem:[#allocation0]]
  $region85: #{tpu_custom_call.1} parent=0
    _
  %s8 = ssub.s32 1, %s6
  %s9 = scalar_select 0, %s8, %s6
  $region1: #{tpu_custom_call.1} parent=0
    #allocation3 [shape = 'u8[4096]{0}', space=vmem, size = 0x1000, scoped, tag = 'input window, operand 1, single buffered']
    #allocation4 [shape = 's32[2]{0}', space=sflag, size = 0x8, scoped, tag = 'scoped memory for tpu_custom_call.1']
    #allocation5 [shape = 's32[2]{0}', space=sflag, size = 0x8, scoped, tag = 'scoped memory for tpu_custom_call.1']
    #allocation6 [shape = 'u8[65536]{0}', space=vmem, size = 0x10000, scoped, tag = 'input window, operand 3']
    #allocation7 [shape = 's32[2]{0}', space=sflag, size = 0x8, scoped, tag = 'scoped memory for tpu_custom_call.1']
    #allocation8 [shape = 'u8[65536]{0}', space=vmem, size = 0x10000, scoped, tag = 'input window, operand 4']
    #allocation9 [shape = 'u8[8192]{0}', space=vmem, size = 0x2000, scoped, tag = 'output window, operand 0']
    %10 = vsyncpa [#allocation4], 0
    %11 = vsyncpa [#allocation7], 0
    %s12 = scalar_lea.sflag [#allocation7], 1
    %13 = vsyncpa %s12, 0
    %14 = vsyncpa [#allocation5], 0
    %s15 = scalar_lea.sflag [#allocation5], 1
    %16 = vsyncpa %s15, 0
    loop: start=0, step=1, limit=4
    $region2: #{tpu_custom_call.1} parent=1 // loop_pre_header
      _
    $region3: #{tpu_custom_call.1} parent=1 // loop_header
      %s18 = sphi 0, %s22
      %p19 = scmp.ge.s32.totalorder %s18, 4
      %s25 = sphi 0, %s37
      %s26 = sphi 0, %s33
      %s27 = sphi 0, %s25
      %s28 = sphi 0, %s26
      %s29 = sphi 0, %s27
      %s30 = sphi 0, %s28
      %s38 = sphi 0, %s38
      %s40 = sphi 0, %s38
      %s41 = sphi 0, %s40
      %s55 = sphi 0, %s41
      %s59 = sphi 0, %s59
      %s61 = sphi 0, %s59
      %s62 = sphi 0, %s61
      %s76 = sphi 0, %s62
      %s80 = sphi 0, %s80
      %s82 = sphi 0, %s80
      %s83 = sphi 0, %s82
      %s97 = sphi 0, %s83
      %s109 = sphi 0, %s111
      %s112 = sphi 0, %s109
      %s113 = sphi 0, %s112
      %s129 = sphi 0, %s113
      %s141 = sphi 0, %s143
      %s144 = sphi 0, %s141
      %s145 = sphi 0, %s144
      %s161 = sphi 0, %s145
      %s167 = sphi 0, %s169
      %s170 = sphi 0, %s167
      %s171 = sphi 0, %s170
      %s187 = sphi 0, %s171
    $region4: #{tpu_custom_call.1} parent=1 // loop_header_branch
      %21 = sbr.rel (%p19) target = $region8
    $region5: #{tpu_custom_call.1} parent=1 // loop_body
      %s23 = ssub.s32 %s18, 1
      %s24 = ssub.s32 %s18, 2
      %s31 = sadd.s32 1, %s26
      %p32 = scmp.ge.s32.totalorder %s31, 1
      %s33 = scalar_select %p32, 0, %s31
      %s34 = sadd.s32 1, %s25
      %s35 = scalar_select %p32, %s34, %s25
      %p36 = scmp.ge.s32.totalorder %s35, 2
      %s37 = scalar_select %p36, 0, %s35
      %s39 = sadd.s32 %s38, 1
      %p42 = scmp.eq.s32.totalorder %s18, 1
      %p43 = scmp.ne.s32.totalorder %s38, %s40
      %p44 = scmp.eq.s32.totalorder %s18, 0
      %p45 = por %p43, %p44
      %p46 = scmp.ne.s32.totalorder %s38, %s40
      %p47 = scmp.eq.s32.totalorder %s23, 1
      %p48 = por %p46, %p47
      %p49 = scmp.ne.s32.totalorder %s40, %s41
      %p50 = scmp.eq.s32.totalorder %s23, 0
      %p51 = por %p49, %p50
      %p52 = scmp.ne.s32.totalorder %s40, %s41
      %p53 = scmp.eq.s32.totalorder %s24, 1
      %p54 = por %p52, %p53
      %p56 = scmp.ne.s32.totalorder %s41, %s55
      %p57 = scmp.eq.s32.totalorder %s24, 0
      %p58 = por %p56, %p57
      %s60 = sadd.s32 %s59, 1
      %p63 = scmp.eq.s32.totalorder %s18, 1
      %p64 = scmp.ne.s32.totalorder %s59, %s61
      %p65 = scmp.eq.s32.totalorder %s18, 0
      %p66 = por %p64, %p65
      %p67 = scmp.ne.s32.totalorder %s59, %s61
      %p68 = scmp.eq.s32.totalorder %s23, 1
      %p69 = por %p67, %p68
      %p70 = scmp.ne.s32.totalorder %s61, %s62
      %p71 = scmp.eq.s32.totalorder %s23, 0
      %p72 = por %p70, %p71
      %p73 = scmp.ne.s32.totalorder %s61, %s62
      %p74 = scmp.eq.s32.totalorder %s24, 1
      %p75 = por %p73, %p74
      %p77 = scmp.ne.s32.totalorder %s62, %s76
      %p78 = scmp.eq.s32.totalorder %s24, 0
      %p79 = por %p77, %p78
      %s81 = sadd.s32 %s80, 1
      %p84 = scmp.eq.s32.totalorder %s18, 1
      %p85 = scmp.ne.s32.totalorder %s80, %s82
      %p86 = scmp.eq.s32.totalorder %s18, 0
      %p87 = por %p85, %p86
      %p88 = scmp.ne.s32.totalorder %s80, %s82
      %p89 = scmp.eq.s32.totalorder %s23, 1
      %p90 = por %p88, %p89
      %p91 = scmp.ne.s32.totalorder %s82, %s83
      %p92 = scmp.eq.s32.totalorder %s23, 0
      %p93 = por %p91, %p92
      %p94 = scmp.ne.s32.totalorder %s82, %s83
      %p95 = scmp.eq.s32.totalorder %s24, 1
      %p96 = por %p94, %p95
      %p98 = scmp.ne.s32.totalorder %s83, %s97
      %p99 = scmp.eq.s32.totalorder %s24, 0
      %p100 = por %p98, %p99
      %s101 = sadd.s32 %s25, %s26
      %p102 = scmp.lt.s32.totalorder %s101, 0
      %s103 = scalar_select %p102, %s101, 0
      %s104 = sadd.s32 %s37, %s33
      %p105 = scmp.lt.s32.totalorder %s104, 0
      %s106 = scalar_select %p105, %s104, 0
      %s107 = ssub.s32 %s103, %s106
      %p108 = scmp.eq.s32.totalorder %s107, 0
      %s110 = sadd.s32 %s109, 1
      %s111 = scalar_select %p108, %s109, %s110
      %p114 = pneg %p108
      %p115 = scmp.eq.s32.totalorder %s18, 1
      %p116 = por %p114, %p115
      %p117 = scmp.ne.s32.totalorder %s109, %s112
      %p118 = scmp.eq.s32.totalorder %s18, 0
      %p119 = por %p117, %p118
      %p120 = scmp.ne.s32.totalorder %s109, %s112
      %p121 = scmp.eq.s32.totalorder %s23, 1
      %p122 = por %p120, %p121
      %p123 = scmp.ne.s32.totalorder %s112, %s113
      %p124 = scmp.eq.s32.totalorder %s23, 0
      %p125 = por %p123, %p124
      %p126 = scmp.ne.s32.totalorder %s112, %s113
      %p127 = scmp.eq.s32.totalorder %s24, 1
      %p128 = por %p126, %p127
      %p130 = scmp.ne.s32.totalorder %s113, %s129
      %p131 = scmp.eq.s32.totalorder %s24, 0
      %p132 = por %p130, %p131
      %s133 = sadd.s32 %s25, %s26
      %p134 = scmp.lt.s32.totalorder %s133, 0
      %s135 = scalar_select %p134, %s133, 0
      %s136 = sadd.s32 %s37, %s33
      %p137 = scmp.lt.s32.totalorder %s136, 0
      %s138 = scalar_select %p137, %s136, 0
      %s139 = ssub.s32 %s135, %s138
      %p140 = scmp.eq.s32.totalorder %s139, 0
      %s142 = sadd.s32 %s141, 1
      %s143 = scalar_select %p140, %s141, %s142
      %p146 = pneg %p140
      %p147 = scmp.eq.s32.totalorder %s18, 1
      %p148 = por %p146, %p147
      %p149 = scmp.ne.s32.totalorder %s141, %s144
      %p150 = scmp.eq.s32.totalorder %s18, 0
      %p151 = por %p149, %p150
      %p152 = scmp.ne.s32.totalorder %s141, %s144
      %p153 = scmp.eq.s32.totalorder %s23, 1
      %p154 = por %p152, %p153
      %p155 = scmp.ne.s32.totalorder %s144, %s145
      %p156 = scmp.eq.s32.totalorder %s23, 0
      %p157 = por %p155, %p156
      %p158 = scmp.ne.s32.totalorder %s144, %s145
      %p159 = scmp.eq.s32.totalorder %s24, 1
      %p160 = por %p158, %p159
      %p162 = scmp.ne.s32.totalorder %s145, %s161
      %p163 = scmp.eq.s32.totalorder %s24, 0
      %p164 = por %p162, %p163
      %s165 = ssub.s32 %s25, %s37
      %p166 = scmp.eq.s32.totalorder %s165, 0
      %s168 = sadd.s32 %s167, 1
      %s169 = scalar_select %p166, %s167, %s168
      %p172 = pneg %p166
      %p173 = scmp.eq.s32.totalorder %s18, 1
      %p174 = por %p172, %p173
      %p175 = scmp.ne.s32.totalorder %s167, %s170
      %p176 = scmp.eq.s32.totalorder %s18, 0
      %p177 = por %p175, %p176
      %p178 = scmp.ne.s32.totalorder %s167, %s170
      %p179 = scmp.eq.s32.totalorder %s23, 1
      %p180 = por %p178, %p179
      %p181 = scmp.ne.s32.totalorder %s170, %s171
      %p182 = scmp.eq.s32.totalorder %s23, 0
      %p183 = por %p181, %p182
      %p184 = scmp.ne.s32.totalorder %s170, %s171
      %p185 = scmp.eq.s32.totalorder %s24, 1
      %p186 = por %p184, %p185
      %p188 = scmp.ne.s32.totalorder %s171, %s187
      %p189 = scmp.eq.s32.totalorder %s24, 0
      %p190 = por %p188, %p189
      %p191 = scmp.le.s32.totalorder 1, %s18
      %p192 = scmp.lt.s32.totalorder %s18, 3
      %p193 = pnand %p191, %p192
      %p194 = pneg %p193
      // Predicated region
      $region9: #{tpu_custom_call.1} parent=5 // pred_check
        _
      $region10: #{tpu_custom_call.1} parent=5 // pred_check_branch
        %196 = sbr.rel (%p193) target = $region12
      $region11: #{tpu_custom_call.1} parent=5 // pred_region
        %s197 = ssub.s32 %s18, 1
        // Predicated region
        $region13: #{tpu_custom_call.1} parent=11 // pred_check
          %p198 = pneg %p51
        $region14: #{tpu_custom_call.1} parent=11 // pred_check_branch
          %200 = sbr.rel (%p198) target = $region16
        $region15: #{tpu_custom_call.1} parent=11 // pred_region
          _
        $region16: #{tpu_custom_call.1} parent=11 // pred_fallthru
          _
        // Predicated region
        $region17: #{tpu_custom_call.1} parent=11 // pred_check
          %p201 = pneg %p72
        $region18: #{tpu_custom_call.1} parent=11 // pred_check_branch
          %203 = sbr.rel (%p201) target = $region20
        $region19: #{tpu_custom_call.1} parent=11 // pred_region
          %205 = vsyncadd [#allocation4], 0
          %s207 = sshll.u32 %s1, 4
          %s208 = int_to_ptr.hbm [resolvable:$true] %s207
          %s209 = sshll.u32 [#allocation3], 4
          %s210 = int_to_ptr.vmem [resolvable:$true] %s209
          %212 = dma.hbm_to_vmem [thread:$0]  %s208, 128, %s210, [#allocation4]
        $region20: #{tpu_custom_call.1} parent=11 // pred_fallthru
          _
        // Predicated region
        $region21: #{tpu_custom_call.1} parent=11 // pred_check
          %p213 = pneg %p93
        $region22: #{tpu_custom_call.1} parent=11 // pred_check_branch
          %215 = sbr.rel (%p213) target = $region24
        $region23: #{tpu_custom_call.1} parent=11 // pred_region
          _
        $region24: #{tpu_custom_call.1} parent=11 // pred_fallthru
          _
      $region12: #{tpu_custom_call.1} parent=5 // pred_fallthru
        _
      %p216 = scmp.lt.s32.totalorder %s18, 2
      // Predicated region
      $region25: #{tpu_custom_call.1} parent=5 // pred_check
        %p217 = pneg %p216
      $region26: #{tpu_custom_call.1} parent=5 // pred_check_branch
        %219 = sbr.rel (%p217) target = $region28
      $region27: #{tpu_custom_call.1} parent=5 // pred_region
        // Predicated region
        $region29: #{tpu_custom_call.1} parent=27 // pred_check
          %p220 = pneg %p119
        $region30: #{tpu_custom_call.1} parent=27 // pred_check_branch
          %222 = sbr.rel (%p220) target = $region32
        $region31: #{tpu_custom_call.1} parent=27 // pred_region
          %s223 = sand.u32 %s18, 1
          %s224 = scalar_lea.sflag [#allocation7], %s223
          %s225 = sand.u32 %s109, 1
          %s226 = smul.addr %s225, 64
          %s227 = scalar_lea.vmem [#allocation6], %s226
          %s228 = sadd.s32 %s25, %s26
          %p229 = scmp.lt.s32.totalorder %s228, 0
          %s230 = scalar_select %p229, %s228, 0
          %232 = vsyncadd %s224, 0
          %s233 = smul.addr %s230, 16
          %s234 = smul.addr %s233, 4
          %s235 = scalar_lea.hbm %s3, %s234
          %s237 = sshll.u32 %s235, 4
          %s238 = int_to_ptr.hbm [resolvable:$true] %s237
          %s239 = sshll.u32 %s227, 4
          %s240 = int_to_ptr.vmem [resolvable:$true] %s239
          %242 = dma.hbm_to_vmem [thread:$0]  %s238, 1024, %s240, %s224
        $region32: #{tpu_custom_call.1} parent=27 // pred_fallthru
          _
        // Predicated region
        $region33: #{tpu_custom_call.1} parent=27 // pred_check
          %p243 = pneg %p151
        $region34: #{tpu_custom_call.1} parent=27 // pred_check_branch
          %245 = sbr.rel (%p243) target = $region36
        $region35: #{tpu_custom_call.1} parent=27 // pred_region
          %s246 = sand.u32 %s18, 1
          %s247 = scalar_lea.sflag [#allocation7], %s246
          %s248 = sand.u32 %s141, 1
          %s249 = smul.addr %s248, 64
          %s250 = scalar_lea.vmem [#allocation8], %s249
          %s251 = sadd.s32 %s25, %s26
          %p252 = scmp.lt.s32.totalorder %s251, 0
          %s253 = scalar_select %p252, %s251, 0
          %255 = vsyncadd %s247, 0
          %s256 = smul.addr %s253, 16
          %s257 = smul.addr %s256, 4
          %s258 = scalar_lea.hbm %s4, %s257
          %s260 = sshll.u32 %s258, 4
          %s261 = int_to_ptr.hbm [resolvable:$true] %s260
          %s262 = sshll.u32 %s250, 4
          %s263 = int_to_ptr.vmem [resolvable:$true] %s262
          %265 = dma.hbm_to_vmem [thread:$0]  %s261, 1024, %s263, %s247
        $region36: #{tpu_custom_call.1} parent=27 // pred_fallthru
          _
      $region28: #{tpu_custom_call.1} parent=5 // pred_fallthru
        _
      %p266 = scmp.le.s32.totalorder 1, %s18
      %p267 = scmp.lt.s32.totalorder %s18, 3
      %p268 = pnand %p266, %p267
      %p269 = pneg %p268
      // Predicated region
      $region37: #{tpu_custom_call.1} parent=5 // pred_check
        _
      $region38: #{tpu_custom_call.1} parent=5 // pred_check_branch
        %271 = sbr.rel (%p268) target = $region40
      $region39: #{tpu_custom_call.1} parent=5 // pred_region
        %s272 = ssub.s32 %s18, 1
        // Predicated region
        $region41: #{tpu_custom_call.1} parent=39 // pred_check
          %p273 = pneg %p72
        $region42: #{tpu_custom_call.1} parent=39 // pred_check_branch
          %275 = sbr.rel (%p273) target = $region44
        $region43: #{tpu_custom_call.1} parent=39 // pred_region
          %277 = dma.done [#allocation4], 128
        $region44: #{tpu_custom_call.1} parent=39 // pred_fallthru
          _
        %s278 = sand.u32 %s23, 1
        %s279 = scalar_lea.sflag [#allocation7], %s278
        %s280 = sand.u32 %s112, 1
        %s281 = smul.addr %s280, 64
        %s282 = scalar_lea.vmem [#allocation6], %s281
        // Predicated region
        $region45: #{tpu_custom_call.1} parent=39 // pred_check
          %p283 = pneg %p125
        $region46: #{tpu_custom_call.1} parent=39 // pred_check_branch
          %285 = sbr.rel (%p283) target = $region48
        $region47: #{tpu_custom_call.1} parent=39 // pred_region
          %287 = dma.done %s279, 1024
        $region48: #{tpu_custom_call.1} parent=39 // pred_fallthru
          _
        %s288 = sand.u32 %s23, 1
        %s289 = scalar_lea.sflag [#allocation7], %s288
        %s290 = sand.u32 %s144, 1
        %s291 = smul.addr %s290, 64
        %s292 = scalar_lea.vmem [#allocation8], %s291
        // Predicated region
        $region49: #{tpu_custom_call.1} parent=39 // pred_check
          %p293 = pneg %p157
        $region50: #{tpu_custom_call.1} parent=39 // pred_check_branch
          %295 = sbr.rel (%p293) target = $region52
        $region51: #{tpu_custom_call.1} parent=39 // pred_region
          %297 = dma.done %s289, 1024
        $region52: #{tpu_custom_call.1} parent=39 // pred_fallthru
          _
        %p298 = pneg %p51
        %p299 = pneg %p48
        %p300 = pneg %p72
        %p301 = pneg %p69
        %p302 = pneg %p93
        %p303 = pneg %p90
        %s304 = sand.u32 %s23, 1
        %s305 = scalar_lea.sflag [#allocation7], %s304
        %s306 = sand.u32 %s112, 1
        %s307 = smul.addr %s306, 64
        %s308 = scalar_lea.vmem [#allocation6], %s307
        %p309 = pneg %p125
        %p310 = pneg %p122
        %s311 = sand.u32 %s23, 1
        %s312 = scalar_lea.sflag [#allocation7], %s311
        %s313 = sand.u32 %s144, 1
        %s314 = smul.addr %s313, 64
        %s315 = scalar_lea.vmem [#allocation8], %s314
        %p316 = pneg %p157
        %p317 = pneg %p154
        %p318 = pneg %p183
        %p319 = pneg %p180
        %s320 = sand.u32 %s170, 1
        %s321 = scalar_lea.sflag [#allocation5], %s320
        %s322 = sand.u32 %s170, 1
        %s323 = smul.addr %s322, 8
        %s324 = scalar_lea.vmem [#allocation9], %s323
        %s325 = sadd.s32 %s27, %s28
        %p326 = scmp.lt.s32.totalorder %s325, 0
        %s327 = scalar_select %p326, %s325, 0
        %s328 = sadd.s32 %s27, %s28
        %p329 = scmp.lt.s32.totalorder %s328, 0
        %s330 = scalar_select %p329, %s328, 0
        %p331 = scmp.eq.s32.totalorder %s28, 0
        // Predicated region
        $region53: #{tpu_custom_call.1} parent=39 // pred_check
          %p332 = pneg %p331
        $region54: #{tpu_custom_call.1} parent=39 // pred_check_branch
          %334 = sbr.rel (%p332) target = $region56
        $region55: #{tpu_custom_call.1} parent=39 // pred_region
          %335 = vst [vmem:[#allocation2] sm:$0xff] 0.0
          %336 = vst [vmem:[#allocation2 + $0x8] sm:$0xff] 0.0
          %337 = vst [vmem:[#allocation2 + $0x10] sm:$0xff] 0.0
          %338 = vst [vmem:[#allocation2 + $0x18] sm:$0xff] 0.0
          %339 = vst [vmem:[#allocation2 + $0x20] sm:$0xff] 0.0
          %340 = vst [vmem:[#allocation2 + $0x28] sm:$0xff] 0.0
          %341 = vst [vmem:[#allocation2 + $0x30] sm:$0xff] 0.0
          %342 = vst [vmem:[#allocation2 + $0x38] sm:$0xff] 0.0
        $region56: #{tpu_custom_call.1} parent=39 // pred_fallthru
          _
        %v343 = vld [vmem:[%s282] sm:$0xff]
        %v344 = vld [vmem:[%s282 + $0x8] sm:$0xff]
        %v345 = vld [vmem:[%s282 + $0x10] sm:$0xff]
        %v346 = vld [vmem:[%s282 + $0x18] sm:$0xff]
        %v347 = vld [vmem:[%s282 + $0x20] sm:$0xff]
        %v348 = vld [vmem:[%s282 + $0x28] sm:$0xff]
        %v349 = vld [vmem:[%s282 + $0x30] sm:$0xff]
        %v350 = vld [vmem:[%s282 + $0x38] sm:$0xff]
        %v351 = vld [vmem:[%s292] sm:$0xff]
        %v352 = vld [vmem:[%s292 + $0x8] sm:$0xff]
        %v353 = vld [vmem:[%s292 + $0x10] sm:$0xff]
        %v354 = vld [vmem:[%s292 + $0x18] sm:$0xff]
        %v355 = vld [vmem:[%s292 + $0x20] sm:$0xff]
        %v356 = vld [vmem:[%s292 + $0x28] sm:$0xff]
        %v357 = vld [vmem:[%s292 + $0x30] sm:$0xff]
        %v358 = vld [vmem:[%s292 + $0x38] sm:$0xff]
        %v359 = vsub.f32 %v343, %v351
        %v360 = vsub.f32 %v344, %v352
        %v361 = vsub.f32 %v345, %v353
        %v362 = vsub.f32 %v346, %v354
        %v363 = vsub.f32 %v347, %v355
        %v364 = vsub.f32 %v348, %v356
        %v365 = vsub.f32 %v349, %v357
        %v366 = vsub.f32 %v350, %v358
        %v367 = vmul.f32 %v359, %v359
        %v368 = vmul.f32 %v360, %v360
        %v369 = vmul.f32 %v361, %v361
        %v370 = vmul.f32 %v362, %v362
        %v371 = vmul.f32 %v363, %v363
        %v372 = vmul.f32 %v364, %v364
        %v373 = vmul.f32 %v365, %v365
        %v374 = vmul.f32 %v366, %v366
        %s375 = sadd.s32 %s27, %s28
        %s376 = smul.u32 %s375, 4
        %s377 = sadd.s32 %s376, 4
        %p378 = scmp.le.s32.totalorder %s377, 4
        // Predicated region
        $region57: #{tpu_custom_call.1} parent=39 // pred_check
          %p379 = pneg %p378
        $region58: #{tpu_custom_call.1} parent=39 // pred_check_branch
          %381 = sbr.rel (%p379) target = $region60
        $region59: #{tpu_custom_call.1} parent=39 // pred_region
          %v382 = vld [vmem:[#allocation2] sm:$0xff]
          %v383 = vld [vmem:[#allocation2 + $0x8] sm:$0xff]
          %v384 = vld [vmem:[#allocation2 + $0x10] sm:$0xff]
          %v385 = vld [vmem:[#allocation2 + $0x18] sm:$0xff]
          %v386 = vld [vmem:[#allocation2 + $0x20] sm:$0xff]
          %v387 = vld [vmem:[#allocation2 + $0x28] sm:$0xff]
          %v388 = vld [vmem:[#allocation2 + $0x30] sm:$0xff]
          %v389 = vld [vmem:[#allocation2 + $0x38] sm:$0xff]
          %v390 = vadd.f32 %v382, %v367
          %v391 = vadd.f32 %v383, %v368
          %v392 = vadd.f32 %v384, %v369
          %v393 = vadd.f32 %v385, %v370
          %v394 = vadd.f32 %v386, %v371
          %v395 = vadd.f32 %v387, %v372
          %v396 = vadd.f32 %v388, %v373
          %v397 = vadd.f32 %v389, %v374
          %398 = vst [vmem:[#allocation2] sm:$0xff] %v390
          %399 = vst [vmem:[#allocation2 + $0x8] sm:$0xff] %v391
          %400 = vst [vmem:[#allocation2 + $0x10] sm:$0xff] %v392
          %401 = vst [vmem:[#allocation2 + $0x18] sm:$0xff] %v393
          %402 = vst [vmem:[#allocation2 + $0x20] sm:$0xff] %v394
          %403 = vst [vmem:[#allocation2 + $0x28] sm:$0xff] %v395
          %404 = vst [vmem:[#allocation2 + $0x30] sm:$0xff] %v396
          %405 = vst [vmem:[#allocation2 + $0x38] sm:$0xff] %v397
        $region60: #{tpu_custom_call.1} parent=39 // pred_fallthru
          _
        %p406 = scmp.gt.s32.totalorder %s377, 4
        // Predicated region
        $region61: #{tpu_custom_call.1} parent=39 // pred_check
          %p407 = pneg %p406
        $region62: #{tpu_custom_call.1} parent=39 // pred_check_branch
          %409 = sbr.rel (%p407) target = $region64
        $region63: #{tpu_custom_call.1} parent=39 // pred_region
          %v410 = vlaneseq
          %v411 = vshrl.u32 %v410, 7
          %v412 = vstv %s376
          %v413 = vadd.s32 %v411, %v412
          %v414 = vld [vmem:[#allocation2] sm:$0xff]
          %v415 = vld [vmem:[#allocation2 + $0x8] sm:$0xff]
          %v416 = vld [vmem:[#allocation2 + $0x10] sm:$0xff]
          %v417 = vld [vmem:[#allocation2 + $0x18] sm:$0xff]
          %v418 = vld [vmem:[#allocation2 + $0x20] sm:$0xff]
          %v419 = vld [vmem:[#allocation2 + $0x28] sm:$0xff]
          %v420 = vld [vmem:[#allocation2 + $0x30] sm:$0xff]
          %v421 = vld [vmem:[#allocation2 + $0x38] sm:$0xff]
          %vm422 = vcmp.lt.s32.totalorder %v413, 4
          %v423 = vsel %vm422, 1, 0
          %vm424 = vcmp.eq.s32.totalorder %v423, 1
          %433 = vst [vmem:[#allocation1] ss:$2 sm:$0xff] %v367
          %s434 = scalar_lea.vmem [#allocation1], 16
          %435 = vst [vmem:[%s434] ss:$2 sm:$0xff] %v368
          %s436 = scalar_lea.vmem [#allocation1], 32
          %437 = vst [vmem:[%s436] ss:$2 sm:$0xff] %v369
          %s438 = scalar_lea.vmem [#allocation1], 48
          %439 = vst [vmem:[%s438] ss:$2 sm:$0xff] %v370
          %v440 = vld.sshfl [vmem:[#allocation1] sm:$0xff pattern:$0x75316420]
          %v441 = vld.sshfl [vmem:[#allocation1 + $0x8] sm:$0xff pattern:$0x75316420]
          %v442 = vld.sshfl [vmem:[#allocation1 + $0x10] sm:$0xff pattern:$0x75316420]
          %v443 = vld.sshfl [vmem:[#allocation1 + $0x18] sm:$0xff pattern:$0x75316420]
          %v444 = vld.sshfl [vmem:[#allocation1 + $0x20] sm:$0xff pattern:$0x75316420]
          %v445 = vld.sshfl [vmem:[#allocation1 + $0x28] sm:$0xff pattern:$0x75316420]
          %v446 = vld.sshfl [vmem:[#allocation1 + $0x30] sm:$0xff pattern:$0x75316420]
          %v447 = vld.sshfl [vmem:[#allocation1 + $0x38] sm:$0xff pattern:$0x75316420]
          %448 = vst [vmem:[#allocation1] ss:$2 sm:$0xff] %v371
          %449 = vst [vmem:[%s434] ss:$2 sm:$0xff] %v372
          %450 = vst [vmem:[%s436] ss:$2 sm:$0xff] %v373
          %451 = vst [vmem:[%s438] ss:$2 sm:$0xff] %v374
          %v452 = vld.sshfl [vmem:[#allocation1] sm:$0xff pattern:$0x75316420]
          %v453 = vld.sshfl [vmem:[#allocation1 + $0x8] sm:$0xff pattern:$0x75316420]
          %v454 = vld.sshfl [vmem:[#allocation1 + $0x10] sm:$0xff pattern:$0x75316420]
          %v455 = vld.sshfl [vmem:[#allocation1 + $0x18] sm:$0xff pattern:$0x75316420]
          %v456 = vld.sshfl [vmem:[#allocation1 + $0x20] sm:$0xff pattern:$0x75316420]
          %v457 = vld.sshfl [vmem:[#allocation1 + $0x28] sm:$0xff pattern:$0x75316420]
          %v458 = vld.sshfl [vmem:[#allocation1 + $0x30] sm:$0xff pattern:$0x75316420]
          %v459 = vld.sshfl [vmem:[#allocation1 + $0x38] sm:$0xff pattern:$0x75316420]
          %v476 = vsel %vm424, %v440, 0.0
          %v477 = vsel %vm424, %v441, 0.0
          %v478 = vsel %vm424, %v442, 0.0
          %v479 = vsel %vm424, %v443, 0.0
          %v480 = vsel %vm424, %v444, 0.0
          %v481 = vsel %vm424, %v445, 0.0
          %v482 = vsel %vm424, %v446, 0.0
          %v483 = vsel %vm424, %v447, 0.0
          %v484 = vsel %vm424, %v452, 0.0
          %v485 = vsel %vm424, %v453, 0.0
          %v486 = vsel %vm424, %v454, 0.0
          %v487 = vsel %vm424, %v455, 0.0
          %v488 = vsel %vm424, %v456, 0.0
          %v489 = vsel %vm424, %v457, 0.0
          %v490 = vsel %vm424, %v458, 0.0
          %v491 = vsel %vm424, %v459, 0.0
          %v508 = vrot.slane %v477, 4
          %v509 = vrot.slane %v479, 4
          %v510 = vrot.slane %v481, 4
          %v511 = vrot.slane %v483, 4
          %v512 = vrot.slane %v485, 4
          %v513 = vrot.slane %v487, 4
          %v514 = vrot.slane %v489, 4
          %v515 = vrot.slane %v491, 4
          %vm516 = vcmask 1043456
          %v517 = vsel %vm516, %v476, %v508
          %v518 = vsel %vm516, %v478, %v509
          %v519 = vsel %vm516, %v480, %v510
          %v520 = vsel %vm516, %v482, %v511
          %v521 = vsel %vm516, %v484, %v512
          %v522 = vsel %vm516, %v486, %v513
          %v523 = vsel %vm516, %v488, %v514
          %v524 = vsel %vm516, %v490, %v515
          %v533 = vadd.f32 %v414, %v517
          %v534 = vadd.f32 %v415, %v518
          %v535 = vadd.f32 %v416, %v519
          %v536 = vadd.f32 %v417, %v520
          %v537 = vadd.f32 %v418, %v521
          %v538 = vadd.f32 %v419, %v522
          %v539 = vadd.f32 %v420, %v523
          %v540 = vadd.f32 %v421, %v524
          %541 = vst [vmem:[#allocation2] sm:$0xff] %v533
          %542 = vst [vmem:[#allocation2 + $0x8] sm:$0xff] %v534
          %543 = vst [vmem:[#allocation2 + $0x10] sm:$0xff] %v535
          %544 = vst [vmem:[#allocation2 + $0x18] sm:$0xff] %v536
          %545 = vst [vmem:[#allocation2 + $0x20] sm:$0xff] %v537
          %546 = vst [vmem:[#allocation2 + $0x28] sm:$0xff] %v538
          %547 = vst [vmem:[#allocation2 + $0x30] sm:$0xff] %v539
          %548 = vst [vmem:[#allocation2 + $0x38] sm:$0xff] %v540
        $region64: #{tpu_custom_call.1} parent=39 // pred_fallthru
          _
        // Predicated region
        $region65: #{tpu_custom_call.1} parent=39 // pred_check
          %p549 = pneg %p331
        $region66: #{tpu_custom_call.1} parent=39 // pred_check_branch
          %551 = sbr.rel (%p549) target = $region68
        $region67: #{tpu_custom_call.1} parent=39 // pred_region
          %v552 = vld [vmem:[#allocation2] sm:$0xff]
          %v553 = vld [vmem:[#allocation2 + $0x8] sm:$0xff]
          %v554 = vld [vmem:[#allocation2 + $0x10] sm:$0xff]
          %v555 = vld [vmem:[#allocation2 + $0x18] sm:$0xff]
          %v556 = vld [vmem:[#allocation2 + $0x20] sm:$0xff]
          %v557 = vld [vmem:[#allocation2 + $0x28] sm:$0xff]
          %v558 = vld [vmem:[#allocation2 + $0x30] sm:$0xff]
          %v559 = vld [vmem:[#allocation2 + $0x38] sm:$0xff]
          %568 = vst [vmem:[#allocation1] ss:$2 sm:$0xff] %v552
          %s569 = scalar_lea.vmem [#allocation1], 16
          %570 = vst [vmem:[%s569] ss:$2 sm:$0xff] %v553
          %s571 = scalar_lea.vmem [#allocation1], 32
          %572 = vst [vmem:[%s571] ss:$2 sm:$0xff] %v554
          %s573 = scalar_lea.vmem [#allocation1], 48
          %574 = vst [vmem:[%s573] ss:$2 sm:$0xff] %v555
          %v575 = vld.sshfl [vmem:[#allocation1] sm:$0xff pattern:$0x75316420]
          %v576 = vld.sshfl [vmem:[#allocation1 + $0x8] sm:$0xff pattern:$0x75316420]
          %v577 = vld.sshfl [vmem:[#allocation1 + $0x10] sm:$0xff pattern:$0x75316420]
          %v578 = vld.sshfl [vmem:[#allocation1 + $0x18] sm:$0xff pattern:$0x75316420]
          %v579 = vld.sshfl [vmem:[#allocation1 + $0x20] sm:$0xff pattern:$0x75316420]
          %v580 = vld.sshfl [vmem:[#allocation1 + $0x28] sm:$0xff pattern:$0x75316420]
          %v581 = vld.sshfl [vmem:[#allocation1 + $0x30] sm:$0xff pattern:$0x75316420]
          %v582 = vld.sshfl [vmem:[#allocation1 + $0x38] sm:$0xff pattern:$0x75316420]
          %583 = vst [vmem:[#allocation1] ss:$2 sm:$0xff] %v556
          %584 = vst [vmem:[%s569] ss:$2 sm:$0xff] %v557
          %585 = vst [vmem:[%s571] ss:$2 sm:$0xff] %v558
          %586 = vst [vmem:[%s573] ss:$2 sm:$0xff] %v559
          %v587 = vld.sshfl [vmem:[#allocation1] sm:$0xff pattern:$0x75316420]
          %v588 = vld.sshfl [vmem:[#allocation1 + $0x8] sm:$0xff pattern:$0x75316420]
          %v589 = vld.sshfl [vmem:[#allocation1 + $0x10] sm:$0xff pattern:$0x75316420]
          %v590 = vld.sshfl [vmem:[#allocation1 + $0x18] sm:$0xff pattern:$0x75316420]
          %v591 = vld.sshfl [vmem:[#allocation1 + $0x20] sm:$0xff pattern:$0x75316420]
          %v592 = vld.sshfl [vmem:[#allocation1 + $0x28] sm:$0xff pattern:$0x75316420]
          %v593 = vld.sshfl [vmem:[#allocation1 + $0x30] sm:$0xff pattern:$0x75316420]
          %v594 = vld.sshfl [vmem:[#allocation1 + $0x38] sm:$0xff pattern:$0x75316420]
          %vm611 = vcmask 1043456
          %v612 = vsel %vm611, %v575, 0.0
          %v613 = vsel %vm611, %v576, 0.0
          %v614 = vadd.f32 %v612, %v613
          %v615 = vsel %vm611, %v577, 0.0
          %v616 = vadd.f32 %v614, %v615
          %v617 = vsel %vm611, %v578, 0.0
          %v618 = vadd.f32 %v616, %v617
          %v619 = vsel %vm611, %v579, 0.0
          %v620 = vadd.f32 %v618, %v619
          %v621 = vsel %vm611, %v580, 0.0
          %v622 = vadd.f32 %v620, %v621
          %v623 = vsel %vm611, %v581, 0.0
          %v624 = vadd.f32 %v622, %v623
          %v625 = vsel %vm611, %v582, 0.0
          %v626 = vadd.f32 %v624, %v625
          %v627 = vsel %vm611, %v587, 0.0
          %v628 = vadd.f32 %v626, %v627
          %v629 = vsel %vm611, %v588, 0.0
          %v630 = vadd.f32 %v628, %v629
          %v631 = vsel %vm611, %v589, 0.0
          %v632 = vadd.f32 %v630, %v631
          %v633 = vsel %vm611, %v590, 0.0
          %v634 = vadd.f32 %v632, %v633
          %v635 = vsel %vm611, %v591, 0.0
          %v636 = vadd.f32 %v634, %v635
          %v637 = vsel %vm611, %v592, 0.0
          %v638 = vadd.f32 %v636, %v637
          %v639 = vsel %vm611, %v593, 0.0
          %v640 = vadd.f32 %v638, %v639
          %v641 = vsel %vm611, %v594, 0.0
          %v642 = vadd.f32 %v640, %v641
          %643 = vadd.xlane.f32.xlu0 %v642
          %v644 = vpop.xlane.xlu0 %643
          %v645 = vrot.slane %v644, 4
          %v646 = vadd.f32 %v644, %v645
          %v647 = vrot.slane %v646, 2
          %v648 = vadd.f32 %v646, %v647
          %v649 = vrot.slane %v648, 1
          %v650 = vadd.f32 %v648, %v649
          %s651 = vtos %v650
          %s652 = smul.f32 %s651, 1.2207031e-05
          %v653 = vstv %s652
          %654 = vst [vmem:[%s324] sm:$0xff] %v653
          %p655 = scmp.eq.s32.totalorder %s27, 0
          // Predicated region
          $region69: #{tpu_custom_call.1} parent=67 // pred_check
            %p656 = pneg %p655
          $region70: #{tpu_custom_call.1} parent=67 // pred_check_branch
            %658 = sbr.rel (%p656) target = $region72
          $region71: #{tpu_custom_call.1} parent=67 // pred_region
            %v659 = vld [vmem:[%s0] sm:$0xff]
            %vm660 = vcmask 261120
            %v661 = vsel %vm660, %v659, -inf
            %662 = vmax.xlane.f32.xlu0 %v661
            %v663 = vpop.xlane.xlu0 %662
            %v664 = vsub.f32 %v659, %v663
            %v665 = vmul.f32 %v664, 1.442695
            %v666 = vpow.pop %v665
            %v667 = vsel %vm660, %v666, 0.0
            %668 = vadd.xlane.f32.xlu0 %v667
            %v669 = vpop.xlane.xlu0 %668
            %v670 = vlog2.pop %v669
            %v671 = vmul.f32 %v670, 0.6931472
            %v672 = vadd.f32 %v671, %v663
            %v673 = vlaneseq
            %v674 = vand.u32 %v673, 127
            %v675 = vld [vmem:[%s2] sm:$0xff]
            %676 = vset.pattern.permute.xlu0 0
            %677 = vperm.xlu0 %676, %v675
            %v678 = vpop.permute.xlu0 %677
            %vm679 = vcmp.eq.s32.totalorder %v674, %v678
            %v680 = vsel %vm679, %v659, 0.0
            %v681 = vsel %vm660, %v680, 0.0
            %682 = vadd.xlane.f32.xlu0 %v681
            %v683 = vpop.xlane.xlu0 %682
            %v684 = vsub.f32 %v672, %v683
            %vm685 = vcmask 7168
            %v686 = vsel %vm685, %v684, 0.0
            %687 = vadd.xlane.f32.xlu0 %v686
            %v688 = vpop.xlane.xlu0 %687
            %v689 = vrot.slane %v688, 4
            %v690 = vadd.f32 %v688, %v689
            %v691 = vrot.slane %v690, 2
            %v692 = vadd.f32 %v690, %v691
            %v693 = vrot.slane %v692, 1
            %v694 = vadd.f32 %v692, %v693
            %s695 = vtos %v694
            %v696 = vld [vmem:[#allocation3] sm:$0xff]
            %v697 = vsel %vm660, %v696, -inf
            %698 = vmax.xlane.f32.xlu0 %v697
            %v699 = vpop.xlane.xlu0 %698
            %v700 = vsub.f32 %v696, %v699
            %v701 = vmul.f32 %v700, 1.442695
            %v702 = vpow.pop %v701
            %v703 = vsel %vm660, %v702, 0.0
            %704 = vadd.xlane.f32.xlu0 %v703
            %v705 = vpop.xlane.xlu0 %704
            %v706 = vlog2.pop %v705
            %v707 = vmul.f32 %v706, 0.6931472
            %v708 = vadd.f32 %v707, %v699
            %v709 = vsel %vm679, %v696, 0.0
            %v710 = vsel %vm660, %v709, 0.0
            %711 = vadd.xlane.f32.xlu0 %v710
            %v712 = vpop.xlane.xlu0 %711
            %v713 = vsub.f32 %v708, %v712
            %v714 = vsel %vm685, %v713, 0.0
            %715 = vadd.xlane.f32.xlu0 %v714
            %v716 = vpop.xlane.xlu0 %715
            %v717 = vrot.slane %v716, 4
            %v718 = vadd.f32 %v716, %v717
            %v719 = vrot.slane %v718, 2
            %v720 = vadd.f32 %v718, %v719
            %v721 = vrot.slane %v720, 1
            %v722 = vadd.f32 %v720, %v721
            %s723 = vtos %v722
            %s724 = sadd.f32 %s695, %s723
            %s725 = smul.f32 %s724, 0.125
            %v726 = vld [vmem:[%s324] sm:$0xff]
            %v727 = vstv %s725
            %v728 = vadd.f32 %v726, %v727
            %729 = vst [vmem:[%s324] sm:$0xff] %v728
          $region72: #{tpu_custom_call.1} parent=67 // pred_fallthru
            _
        $region68: #{tpu_custom_call.1} parent=39 // pred_fallthru
          _
        %s730 = sand.u32 %s170, 1
        %s731 = scalar_lea.sflag [#allocation5], %s730
        %s732 = sand.u32 %s170, 1
        %s733 = smul.addr %s732, 8
        %s734 = scalar_lea.vmem [#allocation9], %s733
        // Predicated region
        $region73: #{tpu_custom_call.1} parent=39 // pred_check
          %p735 = pneg %p180
        $region74: #{tpu_custom_call.1} parent=39 // pred_check_branch
          %737 = sbr.rel (%p735) target = $region76
        $region75: #{tpu_custom_call.1} parent=39 // pred_region
          %739 = vsyncadd %s731, 0
          %s740 = smul.addr %s27, 8
          %s741 = scalar_lea.hbm %s5, %s740
          %s743 = sshll.u32 %s734, 4
          %s744 = int_to_ptr.vmem [resolvable:$true] %s743
          %s745 = sshll.u32 %s741, 4
          %s746 = int_to_ptr.hbm [resolvable:$true] %s745
          %748 = dma.vmem_to_hbm [thread:$0]  %s744, 128, %s746, %s731
        $region76: #{tpu_custom_call.1} parent=39 // pred_fallthru
          _
      $region40: #{tpu_custom_call.1} parent=5 // pred_fallthru
        _
      %p749 = scmp.le.s32.totalorder 2, %s18
      // Predicated region
      $region77: #{tpu_custom_call.1} parent=5 // pred_check
        %p750 = pneg %p749
      $region78: #{tpu_custom_call.1} parent=5 // pred_check_branch
        %752 = sbr.rel (%p750) target = $region80
      $region79: #{tpu_custom_call.1} parent=5 // pred_region
        %s753 = ssub.s32 %s18, 2
        // Predicated region
        $region81: #{tpu_custom_call.1} parent=79 // pred_check
          %p754 = pneg %p186
        $region82: #{tpu_custom_call.1} parent=79 // pred_check_branch
          %756 = sbr.rel (%p754) target = $region84
        $region83: #{tpu_custom_call.1} parent=79 // pred_region
          %s757 = sand.u32 %s171, 1
          %s758 = scalar_lea.sflag [#allocation5], %s757
          %s759 = sand.u32 %s171, 1
          %s760 = smul.addr %s759, 8
          %s761 = scalar_lea.vmem [#allocation9], %s760
          %763 = dma.done %s758, 128
        $region84: #{tpu_custom_call.1} parent=79 // pred_fallthru
          _
      $region80: #{tpu_custom_call.1} parent=5 // pred_fallthru
        _
    $region6: #{tpu_custom_call.1} parent=1 // loop_footer
      %s22 = sadd.s32 1, %s18
    $region7: #{tpu_custom_call.1} parent=1 // loop_footer_branch
      %17 = sbr.rel target = $region3
    $region8: #{tpu_custom_call.1} parent=1 // loop_exit
      _
    %764 = vsyncpa [#allocation4], 1
    %s765 = scalar_lea.sflag [#allocation4], 1
    %766 = vsyncpa %s765, 1
    %767 = vsyncpa [#allocation7], 1
    %s768 = scalar_lea.sflag [#allocation7], 1
    %769 = vsyncpa %s768, 1
    %770 = vsyncpa [#allocation5], 1
    %s771 = scalar_lea.sflag [#allocation5], 1
    %772 = vsyncpa %s771, 1

</llo_original>
